<compile_context>
chip_gen: v5e
topology: v5e:2x2
jax: 0.10.0
libtpu: 0.0.40
codegen_flags: <defaults>
</compile_context>

<pallas_src>
import functools

import jax
import jax.numpy as jnp
from jax.experimental import pallas as pl
from jax.experimental.pallas import tpu as pltpu

_VMEM = pl.BlockSpec(memory_space=pltpu.MemorySpace.VMEM)
_LANES = 128


def _round_up(n, m=_LANES):
    return ((n + m - 1) // m) * m


# ----------------------------------------------------------------------------
# In-kernel building blocks: bf16 MXU matmuls, f32 accumulate + f32 epilogue.
# ----------------------------------------------------------------------------
def _linear(x, w, b):
    # w is stored bf16; activations are cast to bf16 only at the MXU boundary.
    return jnp.dot(x.astype(jnp.bfloat16), w, preferred_element_type=jnp.float32) + b


def _mlp2_body(x, w1, b1, w2, b2):
    h = jnp.maximum(_linear(x, w1, b1), 0.0)  # ReLU on VPU (f32)
    return _linear(h, w2, b2)


# ----------------------------------------------------------------------------
# Fused phase kernels.
# ----------------------------------------------------------------------------
def _mlp2_kernel(x_ref, w1_ref, b1_ref, w2_ref, b2_ref, o_ref):
    o_ref[...] = _mlp2_body(x_ref[...], w1_ref[...], b1_ref[...],
                            w2_ref[...], b2_ref[...])


def _ae_kernel(x_ref, ew1, eb1, ew2, eb2, dw1, db1, dw2, db2,
               xrec_ref, z_ref):
    # encoder -> z (kept in vregs, also stored lane-dense) -> decoder -> sigmoid
    z = _mlp2_body(x_ref[...], ew1[...], eb1[...], ew2[...], eb2[...])
    z_ref[...] = z
    xrec_ref[...] = jax.nn.sigmoid(
        _mlp2_body(z, dw1[...], db1[...], dw2[...], db2[...]))


def _gan_gen_kernel(x_ref, y_ref,
                    ew1, eb1, ew2, eb2,
                    dw1y, dw1z, db1, dw2, db2,
                    s_ref):
    z_gen = _mlp2_body(x_ref[...], ew1[...], eb1[...], ew2[...], eb2[...])
    # discriminator([y, z]) with the first layer split into y / z blocks,
    # so the concatenation never materializes.
    h = jnp.dot(y_ref[...].astype(jnp.bfloat16), dw1y[...],
                preferred_element_type=jnp.float32)
    h = h + jnp.dot(z_gen.astype(jnp.bfloat16), dw1z[...],
                    preferred_element_type=jnp.float32)
    h = jnp.maximum(h + db1[...], 0.0)
    s_ref[...] = jnp.dot(h.astype(jnp.bfloat16), dw2[...],
                         preferred_element_type=jnp.float32) + db2[...]


def _gan_disc_kernel(x_ref, y_ref, noise_ref,
                     ew1, eb1, ew2, eb2,
                     pw1, pb1, pw2, pb2,
                     dw1y, dw1z, db1, dw2, db2,
                     z_gen_ref, z_prior_ref, s_gen_ref, s_prior_ref):
    y = y_ref[...]
    # prior.sample(y): prior MLP + fresh uniform noise (passed in, fused add)
    z_prior = _mlp2_body(y, pw1[...], pb1[...], pw2[...], pb2[...]) + noise_ref[...]
    z_gen = _mlp2_body(x_ref[...], ew1[...], eb1[...], ew2[...], eb2[...])
    z_gen_ref[...] = z_gen
    z_prior_ref[...] = z_prior

    # discriminator on both latents; y-projection is shared between the two.
    hy = jnp.dot(y.astype(jnp.bfloat16), dw1y[...],
                 preferred_element_type=jnp.float32) + db1[...]
    dw1z_v = dw1z[...]
    dw2_v = dw2[...]
    db2_v = db2[...]
    h_gen = jnp.maximum(
        hy + jnp.dot(z_gen.astype(jnp.bfloat16), dw1z_v,
                     preferred_element_type=jnp.float32), 0.0)
    h_prior = jnp.maximum(
        hy + jnp.dot(z_prior.astype(jnp.bfloat16), dw1z_v,
                     preferred_element_type=jnp.float32), 0.0)
    # Discriminator outputs are logits (no sigmoid), like BCEWithLogits usage.
    s_gen_ref[...] = jnp.dot(h_gen.astype(jnp.bfloat16), dw2_v,
                             preferred_element_type=jnp.float32) + db2_v
    s_prior_ref[...] = jnp.dot(h_prior.astype(jnp.bfloat16), dw2_v,
                               preferred_element_type=jnp.float32) + db2_v


# ----------------------------------------------------------------------------
# Jitted phase wrappers (one pallas_call per phase).
# ----------------------------------------------------------------------------
@functools.partial(jax.jit, static_argnames=("z_dim",))
def forward_ae(params, x, *, z_dim):
    B = x.shape[0]
    x_flat = x.reshape(B, -1).astype(jnp.float32)
    img_flat = x_flat.shape[1]
    enc, dec = params["enc"], params["dec"]
    z_pad = enc[2].shape[1]
    x_rec_flat, z = pl.pallas_call(
        _ae_kernel,
        out_shape=(jax.ShapeDtypeStruct((B, img_flat), jnp.float32),
                   jax.ShapeDtypeStruct((B, z_pad), jnp.float32)),
        in_specs=[_VMEM] * 9,
        out_specs=(_VMEM, _VMEM),
    )(x_flat, *enc, *dec)
    return x_rec_flat.reshape(x.shape), z[:, :z_dim]


@functools.partial(jax.jit, static_argnames=("z_dim",))
def forward_prior(params, relational_batch, *, z_dim):
    B = relational_batch.shape[0]
    r = relational_batch.reshape(B, -1).astype(jnp.float32)
    pw1, pb1, pw2, pb2 = params["prior"]
    pw1 = pw1[: r.shape[1]]  # slice first-layer rows to actual input width (no pad)
    z_pad = pw2.shape[1]
    z = pl.pallas_call(
        _mlp2_kernel,
        out_shape=jax.ShapeDtypeStruct((B, z_pad), jnp.float32),
        in_specs=[_VMEM] * 5,
        out_specs=_VMEM,
    )(r, pw1, pb1, pw2, pb2)
    return z[:, :z_dim]


@jax.jit
def forward_gan_gen(params, x, y):
    B = x.shape[0]
    x_flat = x.reshape(B, -1).astype(jnp.float32)
    y = y.astype(jnp.float32)
    enc, disc = params["enc"], params["disc"]
    score_pad = disc[3].shape[1]
    scores = pl.pallas_call(
        _gan_gen_kernel,
        out_shape=jax.ShapeDtypeStruct((B, score_pad), jnp.float32),
        in_specs=[_VMEM] * 11,
        out_specs=_VMEM,
    )(x_flat, y, *enc, *disc)
    return scores[:, :1]


@functools.partial(jax.jit, static_argnames=("z_dim",))
def forward_gan_disc(params, x, y, key, *, z_dim):
    B = x.shape[0]
    x_flat = x.reshape(B, -1).astype(jnp.float32)
    y = y.astype(jnp.float32)
    y_dim = y.shape[1]
    enc, disc = params["enc"], params["disc"]
    pw1, pb1, pw2, pb2 = params["prior"]
    pw1_y = pw1[:y_dim]  # prior.sample(y) path: row-slice instead of zero-padding y
    z_pad = enc[2].shape[1]
    score_pad = disc[3].shape[1]
    # TODO(synk): the original prior's sampling distribution comes from an
    # injected module; Uniform(-0.1, 0.1) noise on the prior-MLP output is used.
    noise = jax.random.uniform(key, (B, z_pad), jnp.float32, -0.1, 0.1)
    z_gen, z_prior, s_gen, s_prior = pl.pallas_call(
        _gan_disc_kernel,
        out_shape=(jax.ShapeDtypeStruct((B, z_pad), jnp.float32),
                   jax.ShapeDtypeStruct((B, z_pad), jnp.float32),
                   jax.ShapeDtypeStruct((B, score_pad), jnp.float32),
                   jax.ShapeDtypeStruct((B, score_pad), jnp.float32)),
        in_specs=[_VMEM] * 16,
        out_specs=(_VMEM, _VMEM, _VMEM, _VMEM),
    )(x_flat, y, noise, *enc, pw1_y, pb1, pw2, pb2, *disc)
    return (s_gen[:, :1], s_prior[:, :1],
            z_gen[:, :z_dim], z_prior[:, :z_dim])


# ----------------------------------------------------------------------------
# Deterministic synthetic parameters (no checkpoint).  Weights are stored bf16
# (halves weight DMA bytes; MXU-native on v6e/v7x), biases f32.  Output-facing
# dims are zero-padded to 128 lanes so every kernel store is lane-dense; the
# zero-padded rows/cols are numerically inert.
# ----------------------------------------------------------------------------
def _uniform(key, shape, fan_in):
    s = float(fan_in) ** -0.5
    return jax.random.uniform(key, shape, jnp.float32, -s, s)


def _pad_cols(w, n):
    return jnp.pad(w, ((0, 0), (0, n - w.shape[1])))


def _pad_rows(w, n):
    return jnp.pad(w, ((0, n - w.shape[0]), (0, 0)))


def _init_params(key, *, img_flat, y_dim, z_dim, hidden, rel_flat):
    z_pad = _round_up(z_dim)
    score_pad = _LANES
    prior_in = max(y_dim, rel_flat)
    k = jax.random.split(key, 9)

    # encoder: img_flat -> hidden -> z (z padded to z_pad lanes)
    ew1 = _uniform(k[0], (img_flat, hidden), img_flat).astype(jnp.bfloat16)
    eb1 = jnp.zeros((1, hidden), jnp.float32)
    ew2 = _pad_cols(_uniform(k[1], (hidden, z_dim), hidden), z_pad).astype(jnp.bfloat16)
    eb2 = jnp.zeros((1, z_pad), jnp.float32)

    # decoder: z -> hidden -> img_flat (padded z rows are zero)
    dw1 = _pad_rows(_uniform(k[2], (z_dim, hidden), z_dim), z_pad).astype(jnp.bfloat16)
    db1 = jnp.zeros((1, hidden), jnp.float32)
    dw2 = _uniform(k[3], (hidden, img_flat), hidden).astype(jnp.bfloat16)
    db2 = jnp.zeros((1, img_flat), jnp.float32)

    # prior: shared first layer; sample(y) uses its first y_dim rows,
    # forward(relational_batch) uses the first rel_flat rows.
    # TODO(synk): original prior module structure is unknown (injected); a
    # single shared 2-layer MLP with row-sliced first layer is used here.
    pw1 = _uniform(k[4], (prior_in, hidden), prior_in).astype(jnp.bfloat16)
    pb1 = jnp.zeros((1, hidden), jnp.float32)
    pw2 = _pad_cols(_uniform(k[5], (hidden, z_dim), hidden), z_pad).astype(jnp.bfloat16)
    pb2 = jnp.zeros((1, z_pad), jnp.float32)

    # discriminator: [y, z] -> hidden -> 1 (first layer split into y/z blocks;
    # z block rows padded to z_pad, output cols padded to 128 lanes)
    fan = y_dim + z_dim
    dcw1y = _uniform(k[6], (y_dim, hidden), fan).astype(jnp.bfloat16)
    dcw1z = _pad_rows(_uniform(k[7], (z_dim, hidden), fan), z_pad).astype(jnp.bfloat16)
    dcb1 = jnp.zeros((1, hidden), jnp.float32)
    dcw2 = _pad_cols(_uniform(k[8], (hidden, 1), hidden), score_pad).astype(jnp.bfloat16)
    dcb2 = jnp.zeros((1, score_pad), jnp.float32)

    return {
        "enc": (ew1, eb1, ew2, eb2),
        "dec": (dw1, db1, dw2, db2),
        "prior": (pw1, pb1, pw2, pb2),
        "disc": (dcw1y, dcw1z, dcb1, dcw2, dcb2),
    }


class SemiSupervisedAbstractionAutoencoder:
    """JAX/Pallas counterpart of the PyTorch container module."""

    def __init__(self, *, img_shape=(1, 16, 16), y_dim=16, z_dim=32,
                 hidden=128, rel_shape=(8, 16), seed=0):
        self.img_shape = img_shape
        self.y_dim = y_dim
        self.z_dim = z_dim
        img_flat = img_shape[0] * img_shape[1] * img_shape[2]
        rel_flat = rel_shape[0] * rel_shape[1]
        self.params = _init_params(
            jax.random.PRNGKey(seed), img_flat=img_flat, y_dim=y_dim,
            z_dim=z_dim, hidden=hidden, rel_flat=rel_flat)

    # --- phases (mirror the PyTorch forward) ---------------------------------
    def __call__(self, x=None, y=None, relational_batch=None, phase=None, key=None):
        if phase == "ae":
            return forward_ae(self.params, x, z_dim=self.z_dim)
        elif phase == "prior":
            return forward_prior(self.params, relational_batch, z_dim=self.z_dim)
        elif phase == "gan_gen":
            return forward_gan_gen(self.params, x, y)
        elif phase == "gan_disc":
            if key is None:
                # TODO(synk): callers should supply a fresh PRNG key per step.
                key = jax.random.PRNGKey(0)
            return forward_gan_disc(self.params, x, y, key, z_dim=self.z_dim)
        else:
            raise NotImplementedError


if __name__ == "__main__":
    model = SemiSupervisedAbstractionAutoencoder()

    key = jax.random.PRNGKey(0)
    kx, ky, kr, knoise = jax.random.split(key, 4)
    x = jax.random.uniform(kx, (2, 1, 16, 16), jnp.float32)           # NCHW images
    y = jax.random.uniform(ky, (2, 16), jnp.float32)                  # symbolic labels
    relational_batch = jax.random.uniform(kr, (2, 8, 16), jnp.float32)

    # phase 'ae'
    x_rec, z = model(x=x, phase="ae")
    # phase 'prior'
    z_pred = model(relational_batch=relational_batch, phase="prior")
    # phase 'gan_gen'
    gen_score = model(x=x, y=y, phase="gan_gen")
    # phase 'gan_disc' (fresh noise key per call)
    gen_s, prior_s, z_gen, z_prior = model(x=x, y=y, phase="gan_disc", key=knoise)

    for t in (x_rec, z, z_pred, gen_score, gen_s, prior_s, z_gen, z_prior):
        jax.block_until_ready(t)

    assert x_rec.shape == (2, 1, 16, 16)
    assert z.shape == (2, 32)
    assert z_pred.shape == (2, 32)
    assert gen_score.shape == (2, 1)
    assert gen_s.shape == (2, 1) and prior_s.shape == (2, 1)
    assert z_gen.shape == (2, 32) and z_prior.shape == (2, 32)
    print("KERNEL_OK")
</pallas_src>

<mosaic_0001>
module attributes {stable_mosaic.version = 11 : i64} {
  func.func @_ae_kernel(%arg0: memref<2x256xf32, #tpu.memory_space<vmem>>, %arg1: memref<256x128xbf16, #tpu.memory_space<vmem>>, %arg2: memref<1x128xf32, #tpu.memory_space<vmem>>, %arg3: memref<128x128xbf16, #tpu.memory_space<vmem>>, %arg4: memref<1x128xf32, #tpu.memory_space<vmem>>, %arg5: memref<128x128xbf16, #tpu.memory_space<vmem>>, %arg6: memref<1x128xf32, #tpu.memory_space<vmem>>, %arg7: memref<128x256xbf16, #tpu.memory_space<vmem>>, %arg8: memref<1x256xf32, #tpu.memory_space<vmem>>, %arg9: memref<2x256xf32, #tpu.memory_space<vmem>>, %arg10: memref<2x128xf32, #tpu.memory_space<vmem>>) attributes {dimension_semantics = [], scalar_prefetch = 0 : i64, scratch_operands = 0 : i64, tpu.core_type = #tpu.core_type<tc>} {
    %c0 = arith.constant 0 : index
    %c0_0 = arith.constant 0 : index
    %0 = vector.load %arg0[%c0, %c0_0] : memref<2x256xf32, #tpu.memory_space<vmem>>, vector<2x256xf32>
    %c0_1 = arith.constant 0 : index
    %c0_2 = arith.constant 0 : index
    %1 = vector.load %arg1[%c0_1, %c0_2] : memref<256x128xbf16, #tpu.memory_space<vmem>>, vector<256x128xbf16>
    %c0_3 = arith.constant 0 : index
    %c0_4 = arith.constant 0 : index
    %2 = vector.load %arg2[%c0_3, %c0_4] : memref<1x128xf32, #tpu.memory_space<vmem>>, vector<1x128xf32>
    %c0_5 = arith.constant 0 : index
    %c0_6 = arith.constant 0 : index
    %3 = vector.load %arg3[%c0_5, %c0_6] : memref<128x128xbf16, #tpu.memory_space<vmem>>, vector<128x128xbf16>
    %c0_7 = arith.constant 0 : index
    %c0_8 = arith.constant 0 : index
    %4 = vector.load %arg4[%c0_7, %c0_8] : memref<1x128xf32, #tpu.memory_space<vmem>>, vector<1x128xf32>
    %5 = arith.truncf %0 : vector<2x256xf32> to vector<2x256xbf16>
    %cst = arith.constant dense<0.000000e+00> : vector<2x128xf32>
    %6 = tpu.matmul %5, %1, %cst {dimension_numbers = #tpu.dot_dimension_numbers<[1], [0], [0], [1], [0, 0, 1, 1], [], []>} : vector<2x256xbf16>, vector<256x128xbf16>, vector<2x128xf32> -> vector<2x128xf32>
    %7 = vector.broadcast %2 : vector<1x128xf32> to vector<2x128xf32>
    %8 = arith.addf %6, %7 : vector<2x128xf32>
    %cst_9 = arith.constant 0.000000e+00 : f32
    %9 = vector.broadcast %cst_9 : f32 to vector<2x128xf32>
    %10 = arith.maximumf %8, %9 : vector<2x128xf32>
    %11 = arith.truncf %10 : vector<2x128xf32> to vector<2x128xbf16>
    %cst_10 = arith.constant dense<0.000000e+00> : vector<2x128xf32>
    %12 = tpu.matmul %11, %3, %cst_10 {dimension_numbers = #tpu.dot_dimension_numbers<[1], [0], [0], [1], [0, 0, 1, 1], [], []>} : vector<2x128xbf16>, vector<128x128xbf16>, vector<2x128xf32> -> vector<2x128xf32>
    %13 = vector.broadcast %4 : vector<1x128xf32> to vector<2x128xf32>
    %14 = arith.addf %12, %13 : vector<2x128xf32>
    %c0_11 = arith.constant 0 : index
    %c0_12 = arith.constant 0 : index
    %15 = vector.load %arg10[%c0_11, %c0_12] : memref<2x128xf32, #tpu.memory_space<vmem>>, vector<2x128xf32>
    tpu.vector_store %arg10[%c0_11, %c0_12], %14 {strides = array<i32>} : memref<2x128xf32, #tpu.memory_space<vmem>>, vector<2x128xf32>,
    %c0_13 = arith.constant 0 : index
    %c0_14 = arith.constant 0 : index
    %16 = vector.load %arg5[%c0_13, %c0_14] : memref<128x128xbf16, #tpu.memory_space<vmem>>, vector<128x128xbf16>
    %c0_15 = arith.constant 0 : index
    %c0_16 = arith.constant 0 : index
    %17 = vector.load %arg6[%c0_15, %c0_16] : memref<1x128xf32, #tpu.memory_space<vmem>>, vector<1x128xf32>
    %c0_17 = arith.constant 0 : index
    %c0_18 = arith.constant 0 : index
    %18 = vector.load %arg7[%c0_17, %c0_18] : memref<128x256xbf16, #tpu.memory_space<vmem>>, vector<128x256xbf16>
    %c0_19 = arith.constant 0 : index
    %c0_20 = arith.constant 0 : index
    %19 = vector.load %arg8[%c0_19, %c0_20] : memref<1x256xf32, #tpu.memory_space<vmem>>, vector<1x256xf32>
    %20 = arith.truncf %14 : vector<2x128xf32> to vector<2x128xbf16>
    %cst_21 = arith.constant dense<0.000000e+00> : vector<2x128xf32>
    %21 = tpu.matmul %20, %16, %cst_21 {dimension_numbers = #tpu.dot_dimension_numbers<[1], [0], [0], [1], [0, 0, 1, 1], [], []>} : vector<2x128xbf16>, vector<128x128xbf16>, vector<2x128xf32> -> vector<2x128xf32>
    %22 = vector.broadcast %17 : vector<1x128xf32> to vector<2x128xf32>
    %23 = arith.addf %21, %22 : vector<2x128xf32>
    %cst_22 = arith.constant 0.000000e+00 : f32
    %24 = vector.broadcast %cst_22 : f32 to vector<2x128xf32>
    %25 = arith.maximumf %23, %24 : vector<2x128xf32>
    %26 = arith.truncf %25 : vector<2x128xf32> to vector<2x128xbf16>
    %cst_23 = arith.constant dense<0.000000e+00> : vector<2x256xf32>
    %27 = tpu.matmul %26, %18, %cst_23 {dimension_numbers = #tpu.dot_dimension_numbers<[1], [0], [0], [1], [0, 0, 1, 1], [], []>} : vector<2x128xbf16>, vector<128x256xbf16>, vector<2x256xf32> -> vector<2x256xf32>
    %28 = vector.broadcast %19 : vector<1x256xf32> to vector<2x256xf32>
    %29 = arith.addf %27, %28 : vector<2x256xf32>
    %30 = arith.negf %29 : vector<2x256xf32>
    %31 = math.exp %30 : vector<2x256xf32>
    %cst_24 = arith.constant 1.000000e+00 : f32
    %32 = vector.broadcast %cst_24 : f32 to vector<2x256xf32>
    %33 = arith.addf %32, %31 : vector<2x256xf32>
    %34 = arith.divf %32, %33 : vector<2x256xf32>
    %c0_25 = arith.constant 0 : index
    %c0_26 = arith.constant 0 : index
    %35 = vector.load %arg9[%c0_25, %c0_26] : memref<2x256xf32, #tpu.memory_space<vmem>>, vector<2x256xf32>
    tpu.vector_store %arg9[%c0_25, %c0_26], %34 {strides = array<i32>} : memref<2x256xf32, #tpu.memory_space<vmem>>, vector<2x256xf32>,
    return
  }
}

</mosaic_0001>

<llo_original>
// kernel: forward_ae.1
$region0: #{forward_ae.1}
  #allocation0 [shape = 'u32[]', space=smem, size = 0x4, offset = 0x4, fixed_abs, tag = 'smem constant byte address 0x4 - core index']
  #allocation1 [shape = 'u32[72,128]{1,0:T(1,128)}', space=vmem, size = 0x9000, scoped, tag = 'internal scratch']
  %s0 = inlined_call_operand.vmem [shape: f32[2,256], index: 0, kind: input, shape index: {}]
  %s1 = inlined_call_operand.hbm [shape: bf16[256,128], index: 1, kind: input, shape index: {}]
  %s2 = inlined_call_operand.vmem [shape: f32[1,128], index: 2, kind: input, shape index: {}]
  %s3 = inlined_call_operand.hbm [shape: bf16[128,128], index: 3, kind: input, shape index: {}]
  %s4 = inlined_call_operand.vmem [shape: f32[1,128], index: 4, kind: input, shape index: {}]
  %s5 = inlined_call_operand.hbm [shape: bf16[128,128], index: 5, kind: input, shape index: {}]
  %s6 = inlined_call_operand.vmem [shape: f32[1,128], index: 6, kind: input, shape index: {}]
  %s7 = inlined_call_operand.hbm [shape: bf16[128,256], index: 7, kind: input, shape index: {}]
  %s8 = inlined_call_operand.vmem [shape: f32[1,256], index: 8, kind: input, shape index: {}]
  %s9 = inlined_call_operand.vmem [shape: f32[2,256], index: 9, kind: output, shape index: {0}]
  %s10 = inlined_call_operand.hbm [shape: f32[2,128], index: 10, kind: output, shape index: {1}]
  %11 = xla_tuple %s9, %s10
  %s12 = sld [smem:[#allocation0]]
  $region70: #{forward_ae.1} parent=0
    _
  %s14 = ssub.s32 1, %s12
  %s15 = scalar_select 0, %s14, %s12
  $region1: #{forward_ae.1} parent=0
    #allocation2 [shape = 'u8[65536]{0}', space=vmem, size = 0x10000, scoped, tag = 'input window, operand 1, single buffered']
    #allocation3 [shape = 's32[1]{0}', space=sflag, size = 0x4, scoped, tag = 'scoped memory for forward_ae.1']
    #allocation4 [shape = 's32[1]{0}', space=sflag, size = 0x4, scoped, tag = 'scoped memory for forward_ae.1']
    #allocation5 [shape = 'u8[32768]{0}', space=vmem, size = 0x8000, scoped, tag = 'input window, operand 3, single buffered']
    #allocation6 [shape = 's32[1]{0}', space=sflag, size = 0x4, scoped, tag = 'scoped memory for forward_ae.1']
    #allocation7 [shape = 'u8[32768]{0}', space=vmem, size = 0x8000, scoped, tag = 'input window, operand 5, single buffered']
    #allocation8 [shape = 'u8[65536]{0}', space=vmem, size = 0x10000, scoped, tag = 'input window, operand 7, single buffered']
    #allocation9 [shape = 's32[1]{0}', space=sflag, size = 0x4, scoped, tag = 'scoped memory for forward_ae.1']
    #allocation10 [shape = 'u8[1024]{0}', space=vmem, size = 0x400, scoped, tag = 'output window, operand 1, single buffered']
    %16 = vsyncpa [#allocation3], 0
    %17 = vsyncpa [#allocation6], 0
    %18 = vsyncpa [#allocation9], 0
    %19 = vsyncpa [#allocation4], 0
    // Predicated region
    $region2: #{forward_ae.1} parent=1 // pred_check
      _
    $region3: #{forward_ae.1} parent=1 // pred_check_branch
      %21 = sbr.rel (0) target = $region5
    $region4: #{forward_ae.1} parent=1 // pred_region
      _
    $region5: #{forward_ae.1} parent=1 // pred_fallthru
      _
    // Predicated region
    $region6: #{forward_ae.1} parent=1 // pred_check
      _
    $region7: #{forward_ae.1} parent=1 // pred_check_branch
      %23 = sbr.rel (0) target = $region9
    $region8: #{forward_ae.1} parent=1 // pred_region
      %25 = vsyncadd [#allocation3], 0
      %s26 = sshll.u32 %s1, 4
      %s27 = int_to_ptr.hbm [resolvable:$true] %s26
      %s28 = sshll.u32 [#allocation2], 4
      %s29 = int_to_ptr.vmem [resolvable:$true] %s28
      %34 = dma.hbm_to_vmem [thread:$0]  %s27, 2048, %s29, [#allocation3], 64, 64, 4
    $region9: #{forward_ae.1} parent=1 // pred_fallthru
      _
    // Predicated region
    $region10: #{forward_ae.1} parent=1 // pred_check
      _
    $region11: #{forward_ae.1} parent=1 // pred_check_branch
      %36 = sbr.rel (0) target = $region13
    $region12: #{forward_ae.1} parent=1 // pred_region
      _
    $region13: #{forward_ae.1} parent=1 // pred_fallthru
      _
    // Predicated region
    $region14: #{forward_ae.1} parent=1 // pred_check
      _
    $region15: #{forward_ae.1} parent=1 // pred_check_branch
      %38 = sbr.rel (0) target = $region17
    $region16: #{forward_ae.1} parent=1 // pred_region
      %40 = vsyncadd [#allocation6], 0
      %s41 = sshll.u32 %s3, 4
      %s42 = int_to_ptr.hbm [resolvable:$true] %s41
      %s43 = sshll.u32 [#allocation5], 4
      %s44 = int_to_ptr.vmem [resolvable:$true] %s43
      %49 = dma.hbm_to_vmem [thread:$0]  %s42, 1024, %s44, [#allocation6], 64, 64, 4
    $region17: #{forward_ae.1} parent=1 // pred_fallthru
      _
    // Predicated region
    $region18: #{forward_ae.1} parent=1 // pred_check
      _
    $region19: #{forward_ae.1} parent=1 // pred_check_branch
      %51 = sbr.rel (0) target = $region21
    $region20: #{forward_ae.1} parent=1 // pred_region
      _
    $region21: #{forward_ae.1} parent=1 // pred_fallthru
      _
    // Predicated region
    $region22: #{forward_ae.1} parent=1 // pred_check
      _
    $region23: #{forward_ae.1} parent=1 // pred_check_branch
      %53 = sbr.rel (0) target = $region25
    $region24: #{forward_ae.1} parent=1 // pred_region
      %55 = vsyncadd [#allocation6], 0
      %s56 = sshll.u32 %s5, 4
      %s57 = int_to_ptr.hbm [resolvable:$true] %s56
      %s58 = sshll.u32 [#allocation7], 4
      %s59 = int_to_ptr.vmem [resolvable:$true] %s58
      %64 = dma.hbm_to_vmem [thread:$0]  %s57, 1024, %s59, [#allocation6], 64, 64, 4
    $region25: #{forward_ae.1} parent=1 // pred_fallthru
      _
    // Predicated region
    $region26: #{forward_ae.1} parent=1 // pred_check
      _
    $region27: #{forward_ae.1} parent=1 // pred_check_branch
      %66 = sbr.rel (0) target = $region29
    $region28: #{forward_ae.1} parent=1 // pred_region
      _
    $region29: #{forward_ae.1} parent=1 // pred_fallthru
      _
    // Predicated region
    $region30: #{forward_ae.1} parent=1 // pred_check
      _
    $region31: #{forward_ae.1} parent=1 // pred_check_branch
      %68 = sbr.rel (0) target = $region33
    $region32: #{forward_ae.1} parent=1 // pred_region
      %70 = vsyncadd [#allocation9], 0
      %s71 = sshll.u32 %s7, 4
      %s72 = int_to_ptr.hbm [resolvable:$true] %s71
      %s73 = sshll.u32 [#allocation8], 4
      %s74 = int_to_ptr.vmem [resolvable:$true] %s73
      %79 = dma.hbm_to_vmem [thread:$0]  %s72, 2048, %s74, [#allocation9], 128, 128, 8
    $region33: #{forward_ae.1} parent=1 // pred_fallthru
      _
    // Predicated region
    $region34: #{forward_ae.1} parent=1 // pred_check
      _
    $region35: #{forward_ae.1} parent=1 // pred_check_branch
      %81 = sbr.rel (0) target = $region37
    $region36: #{forward_ae.1} parent=1 // pred_region
      _
    $region37: #{forward_ae.1} parent=1 // pred_fallthru
      _
    // Predicated region
    $region38: #{forward_ae.1} parent=1 // pred_check
      _
    $region39: #{forward_ae.1} parent=1 // pred_check_branch
      %83 = sbr.rel (0) target = $region41
    $region40: #{forward_ae.1} parent=1 // pred_region
      %85 = dma.done [#allocation3], 2048
    $region41: #{forward_ae.1} parent=1 // pred_fallthru
      _
    // Predicated region
    $region42: #{forward_ae.1} parent=1 // pred_check
      _
    $region43: #{forward_ae.1} parent=1 // pred_check_branch
      %87 = sbr.rel (0) target = $region45
    $region44: #{forward_ae.1} parent=1 // pred_region
      %89 = dma.done [#allocation6], 1024
    $region45: #{forward_ae.1} parent=1 // pred_fallthru
      _
    // Predicated region
    $region46: #{forward_ae.1} parent=1 // pred_check
      _
    $region47: #{forward_ae.1} parent=1 // pred_check_branch
      %91 = sbr.rel (0) target = $region49
    $region48: #{forward_ae.1} parent=1 // pred_region
      %93 = dma.done [#allocation6], 1024
    $region49: #{forward_ae.1} parent=1 // pred_fallthru
      _
    // Predicated region
    $region50: #{forward_ae.1} parent=1 // pred_check
      _
    $region51: #{forward_ae.1} parent=1 // pred_check_branch
      %95 = sbr.rel (0) target = $region53
    $region52: #{forward_ae.1} parent=1 // pred_region
      %97 = dma.done [#allocation9], 2048
    $region53: #{forward_ae.1} parent=1 // pred_fallthru
      _
    %v98 = vld [vmem:[%s0] sm:$0xf]
    %v99 = vld [vmem:[#allocation2] sm:$0xf]
    %v100 = vld [vmem:[#allocation2 + $0x4] sm:$0xf]
    %v101 = vld [vmem:[#allocation2 + $0x8] sm:$0xf]
    %v102 = vld [vmem:[#allocation2 + $0xc] sm:$0xf]
    %v103 = vld [vmem:[#allocation2 + $0x10] sm:$0xf]
    %v104 = vld [vmem:[#allocation2 + $0x14] sm:$0xf]
    %v105 = vld [vmem:[#allocation2 + $0x18] sm:$0xf]
    %v106 = vld [vmem:[#allocation2 + $0x1c] sm:$0xf]
    %v107 = vld [vmem:[#allocation2 + $0x20] sm:$0xf]
    %v108 = vld [vmem:[#allocation2 + $0x24] sm:$0xf]
    %v109 = vld [vmem:[#allocation2 + $0x28] sm:$0xf]
    %v110 = vld [vmem:[#allocation2 + $0x2c] sm:$0xf]
    %v111 = vld [vmem:[#allocation2 + $0x30] sm:$0xf]
    %v112 = vld [vmem:[#allocation2 + $0x34] sm:$0xf]
    %v113 = vld [vmem:[#allocation2 + $0x38] sm:$0xf]
    %v114 = vld [vmem:[#allocation2 + $0x3c] sm:$0xf]
    %v115 = vld [vmem:[#allocation2 + $0x40] sm:$0xf]
    %v116 = vld [vmem:[#allocation2 + $0x44] sm:$0xf]
    %v117 = vld [vmem:[#allocation2 + $0x48] sm:$0xf]
    %v118 = vld [vmem:[#allocation2 + $0x4c] sm:$0xf]
    %v119 = vld [vmem:[#allocation2 + $0x50] sm:$0xf]
    %v120 = vld [vmem:[#allocation2 + $0x54] sm:$0xf]
    %v121 = vld [vmem:[#allocation2 + $0x58] sm:$0xf]
    %v122 = vld [vmem:[#allocation2 + $0x5c] sm:$0xf]
    %v123 = vld [vmem:[#allocation2 + $0x60] sm:$0xf]
    %v124 = vld [vmem:[#allocation2 + $0x64] sm:$0xf]
    %v125 = vld [vmem:[#allocation2 + $0x68] sm:$0xf]
    %v126 = vld [vmem:[#allocation2 + $0x6c] sm:$0xf]
    %v127 = vld [vmem:[#allocation2 + $0x70] sm:$0xf]
    %v128 = vld [vmem:[#allocation2 + $0x74] sm:$0xf]
    %v129 = vld [vmem:[#allocation2 + $0x78] sm:$0xf]
    %v130 = vld [vmem:[#allocation2 + $0x7c] sm:$0xf]
    %v131 = vld [vmem:[%s2] sm:$0x1]
    %v132 = vld [vmem:[#allocation5] sm:$0xf]
    %v133 = vld [vmem:[#allocation5 + $0x4] sm:$0xf]
    %v134 = vld [vmem:[#allocation5 + $0x8] sm:$0xf]
    %v135 = vld [vmem:[#allocation5 + $0xc] sm:$0xf]
    %v136 = vld [vmem:[#allocation5 + $0x10] sm:$0xf]
    %v137 = vld [vmem:[#allocation5 + $0x14] sm:$0xf]
    %v138 = vld [vmem:[#allocation5 + $0x18] sm:$0xf]
    %v139 = vld [vmem:[#allocation5 + $0x1c] sm:$0xf]
    %v140 = vld [vmem:[#allocation5 + $0x20] sm:$0xf]
    %v141 = vld [vmem:[#allocation5 + $0x24] sm:$0xf]
    %v142 = vld [vmem:[#allocation5 + $0x28] sm:$0xf]
    %v143 = vld [vmem:[#allocation5 + $0x2c] sm:$0xf]
    %v144 = vld [vmem:[#allocation5 + $0x30] sm:$0xf]
    %v145 = vld [vmem:[#allocation5 + $0x34] sm:$0xf]
    %v146 = vld [vmem:[#allocation5 + $0x38] sm:$0xf]
    %v147 = vld [vmem:[#allocation5 + $0x3c] sm:$0xf]
    %v148 = vld [vmem:[%s4] sm:$0x1]
    %150 = vst [vmem:[#allocation1] ss:$4 sm:$0xff] %v98
    %v151 = vld.sshfl [vmem:[#allocation1] sm:$0xff pattern:$0x73625140]
    %v152 = vld.sshfl [vmem:[#allocation1 + $0x8] sm:$0xff pattern:$0x73625140]
    %v155 = vpack.c.bf16 %v151, %v151
    %v156 = vpack.c.bf16 %v152, %v152
    %v158 = vperm.slane %v131, 0
    %v192 = vunpack.c.l.b16 %v99
    %v193 = vunpack.c.l.b16 %v100
    %v194 = vunpack.c.l.b16 %v101
    %v195 = vunpack.c.l.b16 %v102
    %v196 = vunpack.c.l.b16 %v103
    %v197 = vunpack.c.l.b16 %v104
    %v198 = vunpack.c.l.b16 %v105
    %v199 = vunpack.c.l.b16 %v106
    %v200 = vunpack.c.l.b16 %v107
    %v201 = vunpack.c.l.b16 %v108
    %v202 = vunpack.c.l.b16 %v109
    %v203 = vunpack.c.l.b16 %v110
    %v204 = vunpack.c.l.b16 %v111
    %v205 = vunpack.c.l.b16 %v112
    %v206 = vunpack.c.l.b16 %v113
    %v207 = vunpack.c.l.b16 %v114
    %v208 = vunpack.c.l.b16 %v115
    %v209 = vunpack.c.l.b16 %v116
    %v210 = vunpack.c.l.b16 %v117
    %v211 = vunpack.c.l.b16 %v118
    %v212 = vunpack.c.l.b16 %v119
    %v213 = vunpack.c.l.b16 %v120
    %v214 = vunpack.c.l.b16 %v121
    %v215 = vunpack.c.l.b16 %v122
    %v216 = vunpack.c.l.b16 %v123
    %v217 = vunpack.c.l.b16 %v124
    %v218 = vunpack.c.l.b16 %v125
    %v219 = vunpack.c.l.b16 %v126
    %v220 = vunpack.c.l.b16 %v127
    %v221 = vunpack.c.l.b16 %v128
    %v222 = vunpack.c.l.b16 %v129
    %v223 = vunpack.c.l.b16 %v130
    %v224 = vpack.c.b16 %v193, %v192
    %v225 = vpack.c.b16 %v195, %v194
    %v226 = vpack.c.b16 %v197, %v196
    %v227 = vpack.c.b16 %v199, %v198
    %v228 = vpack.c.b16 %v201, %v200
    %v229 = vpack.c.b16 %v203, %v202
    %v230 = vpack.c.b16 %v205, %v204
    %v231 = vpack.c.b16 %v207, %v206
    %v232 = vpack.c.b16 %v209, %v208
    %v233 = vpack.c.b16 %v211, %v210
    %v234 = vpack.c.b16 %v213, %v212
    %v235 = vpack.c.b16 %v215, %v214
    %v236 = vpack.c.b16 %v217, %v216
    %v237 = vpack.c.b16 %v219, %v218
    %v238 = vpack.c.b16 %v221, %v220
    %v239 = vpack.c.b16 %v223, %v222
    %256 = vmatpush.bf16.msra.mxu0 %v231
    %257 = vmatpush.bf16.msra.mxu0 %v230
    %258 = vmatpush.bf16.msra.mxu0 %v229
    %259 = vmatpush.bf16.msra.mxu0 %v228
    %260 = vmatpush.bf16.msra.mxu0 %v227
    %261 = vmatpush.bf16.msra.mxu0 %v226
    %262 = vmatpush.bf16.msra.mxu0 %v225
    %263 = vmatpush.bf16.msra.mxu0 %v224
    %264 = vmatmul.bf16.gmra.mxu0 %v155
    %v265 = vpop.f32.mrf.mxu0
    %v266 = vadd.f32 %v158, %v265
    %v267 = vpop.f32.mrf.mxu0
    %268 = vdwg.mxu0
    %269 = vmatpush.bf16.msra.mxu0 %v239
    %270 = vmatpush.bf16.msra.mxu0 %v238
    %271 = vmatpush.bf16.msra.mxu0 %v237
    %272 = vmatpush.bf16.msra.mxu0 %v236
    %273 = vmatpush.bf16.msra.mxu0 %v235
    %274 = vmatpush.bf16.msra.mxu0 %v234
    %275 = vmatpush.bf16.msra.mxu0 %v233
    %276 = vmatpush.bf16.msra.mxu0 %v232
    %277 = vmatmul.bf16.gmra.mxu0 %v156
    %v278 = vpop.f32.mrf.mxu0
    %v279 = vadd.f32 %v266, %v278
    %v280 = vpop.f32.mrf.mxu0
    %281 = vdwg.mxu0
    %v282 = vmax.f32 %v279, 0.0
    %v283 = vpack.c.bf16 %v282, %v282
    %v285 = vperm.slane %v148, 0
    %v303 = vunpack.c.l.b16 %v132
    %v304 = vunpack.c.l.b16 %v133
    %v305 = vunpack.c.l.b16 %v134
    %v306 = vunpack.c.l.b16 %v135
    %v307 = vunpack.c.l.b16 %v136
    %v308 = vunpack.c.l.b16 %v137
    %v309 = vunpack.c.l.b16 %v138
    %v310 = vunpack.c.l.b16 %v139
    %v311 = vunpack.c.l.b16 %v140
    %v312 = vunpack.c.l.b16 %v141
    %v313 = vunpack.c.l.b16 %v142
    %v314 = vunpack.c.l.b16 %v143
    %v315 = vunpack.c.l.b16 %v144
    %v316 = vunpack.c.l.b16 %v145
    %v317 = vunpack.c.l.b16 %v146
    %v318 = vunpack.c.l.b16 %v147
    %v319 = vpack.c.b16 %v304, %v303
    %v320 = vpack.c.b16 %v306, %v305
    %v321 = vpack.c.b16 %v308, %v307
    %v322 = vpack.c.b16 %v310, %v309
    %v323 = vpack.c.b16 %v312, %v311
    %v324 = vpack.c.b16 %v314, %v313
    %v325 = vpack.c.b16 %v316, %v315
    %v326 = vpack.c.b16 %v318, %v317
    %335 = vmatpush.bf16.msra.mxu0 %v326
    %336 = vmatpush.bf16.msra.mxu0 %v325
    %337 = vmatpush.bf16.msra.mxu0 %v324
    %338 = vmatpush.bf16.msra.mxu0 %v323
    %339 = vmatpush.bf16.msra.mxu0 %v322
    %340 = vmatpush.bf16.msra.mxu0 %v321
    %341 = vmatpush.bf16.msra.mxu0 %v320
    %342 = vmatpush.bf16.msra.mxu0 %v319
    %343 = vmatmul.bf16.gmra.mxu0 %v283
    %v344 = vpop.f32.mrf.mxu0
    %v345 = vadd.f32 %v285, %v344
    %v346 = vpop.f32.mrf.mxu0
    %347 = vdwg.mxu0
    %348 = vst [vmem:[#allocation10] sm:$0x3] %v345
    %v349 = vld [vmem:[#allocation7] sm:$0xf]
    %v350 = vld [vmem:[#allocation7 + $0x4] sm:$0xf]
    %v351 = vld [vmem:[#allocation7 + $0x8] sm:$0xf]
    %v352 = vld [vmem:[#allocation7 + $0xc] sm:$0xf]
    %v353 = vld [vmem:[#allocation7 + $0x10] sm:$0xf]
    %v354 = vld [vmem:[#allocation7 + $0x14] sm:$0xf]
    %v355 = vld [vmem:[#allocation7 + $0x18] sm:$0xf]
    %v356 = vld [vmem:[#allocation7 + $0x1c] sm:$0xf]
    %v357 = vld [vmem:[#allocation7 + $0x20] sm:$0xf]
    %v358 = vld [vmem:[#allocation7 + $0x24] sm:$0xf]
    %v359 = vld [vmem:[#allocation7 + $0x28] sm:$0xf]
    %v360 = vld [vmem:[#allocation7 + $0x2c] sm:$0xf]
    %v361 = vld [vmem:[#allocation7 + $0x30] sm:$0xf]
    %v362 = vld [vmem:[#allocation7 + $0x34] sm:$0xf]
    %v363 = vld [vmem:[#allocation7 + $0x38] sm:$0xf]
    %v364 = vld [vmem:[#allocation7 + $0x3c] sm:$0xf]
    %v365 = vld [vmem:[%s6] sm:$0x1]
    %v366 = vld [vmem:[#allocation8] sm:$0xff]
    %v367 = vld [vmem:[#allocation8 + $0x8] sm:$0xff]
    %v368 = vld [vmem:[#allocation8 + $0x10] sm:$0xff]
    %v369 = vld [vmem:[#allocation8 + $0x18] sm:$0xff]
    %v370 = vld [vmem:[#allocation8 + $0x20] sm:$0xff]
    %v371 = vld [vmem:[#allocation8 + $0x28] sm:$0xff]
    %v372 = vld [vmem:[#allocation8 + $0x30] sm:$0xff]
    %v373 = vld [vmem:[#allocation8 + $0x38] sm:$0xff]
    %v374 = vld [vmem:[#allocation8 + $0x40] sm:$0xff]
    %v375 = vld [vmem:[#allocation8 + $0x48] sm:$0xff]
    %v376 = vld [vmem:[#allocation8 + $0x50] sm:$0xff]
    %v377 = vld [vmem:[#allocation8 + $0x58] sm:$0xff]
    %v378 = vld [vmem:[#allocation8 + $0x60] sm:$0xff]
    %v379 = vld [vmem:[#allocation8 + $0x68] sm:$0xff]
    %v380 = vld [vmem:[#allocation8 + $0x70] sm:$0xff]
    %v381 = vld [vmem:[#allocation8 + $0x78] sm:$0xff]
    %v382 = vld [vmem:[%s8] sm:$0x3]
    %v383 = vpack.c.bf16 %v345, %v345
    %v385 = vperm.slane %v365, 0
    %v403 = vunpack.c.l.b16 %v349
    %v404 = vunpack.c.l.b16 %v350
    %v405 = vunpack.c.l.b16 %v351
    %v406 = vunpack.c.l.b16 %v352
    %v407 = vunpack.c.l.b16 %v353
    %v408 = vunpack.c.l.b16 %v354
    %v409 = vunpack.c.l.b16 %v355
    %v410 = vunpack.c.l.b16 %v356
    %v411 = vunpack.c.l.b16 %v357
    %v412 = vunpack.c.l.b16 %v358
    %v413 = vunpack.c.l.b16 %v359
    %v414 = vunpack.c.l.b16 %v360
    %v415 = vunpack.c.l.b16 %v361
    %v416 = vunpack.c.l.b16 %v362
    %v417 = vunpack.c.l.b16 %v363
    %v418 = vunpack.c.l.b16 %v364
    %v419 = vpack.c.b16 %v404, %v403
    %v420 = vpack.c.b16 %v406, %v405
    %v421 = vpack.c.b16 %v408, %v407
    %v422 = vpack.c.b16 %v410, %v409
    %v423 = vpack.c.b16 %v412, %v411
    %v424 = vpack.c.b16 %v414, %v413
    %v425 = vpack.c.b16 %v416, %v415
    %v426 = vpack.c.b16 %v418, %v417
    %435 = vmatpush.bf16.msra.mxu0 %v426
    %436 = vmatpush.bf16.msra.mxu0 %v425
    %437 = vmatpush.bf16.msra.mxu0 %v424
    %438 = vmatpush.bf16.msra.mxu0 %v423
    %439 = vmatpush.bf16.msra.mxu0 %v422
    %440 = vmatpush.bf16.msra.mxu0 %v421
    %441 = vmatpush.bf16.msra.mxu0 %v420
    %442 = vmatpush.bf16.msra.mxu0 %v419
    %443 = vmatmul.bf16.gmra.mxu0 %v383
    %v444 = vpop.f32.mrf.mxu0
    %v445 = vadd.f32 %v385, %v444
    %v446 = vpop.f32.mrf.mxu0
    %447 = vdwg.mxu0
    %v448 = vmax.f32 %v445, 0.0
    %v449 = vpack.c.bf16 %v448, %v448
    %v451 = vperm.slane %v382, 0
    %v452 = vperm.slane %v382, 1
    %v471 = vunpack.c.l.b16 %v366
    %v472 = vunpack.c.h.b16 %v366
    %v473 = vunpack.c.l.b16 %v367
    %v474 = vunpack.c.h.b16 %v367
    %v475 = vunpack.c.l.b16 %v368
    %v476 = vunpack.c.h.b16 %v368
    %v477 = vunpack.c.l.b16 %v369
    %v478 = vunpack.c.h.b16 %v369
    %v479 = vunpack.c.l.b16 %v370
    %v480 = vunpack.c.h.b16 %v370
    %v481 = vunpack.c.l.b16 %v371
    %v482 = vunpack.c.h.b16 %v371
    %v483 = vunpack.c.l.b16 %v372
    %v484 = vunpack.c.h.b16 %v372
    %v485 = vunpack.c.l.b16 %v373
    %v486 = vunpack.c.h.b16 %v373
    %v487 = vunpack.c.l.b16 %v374
    %v488 = vunpack.c.h.b16 %v374
    %v489 = vunpack.c.l.b16 %v375
    %v490 = vunpack.c.h.b16 %v375
    %v491 = vunpack.c.l.b16 %v376
    %v492 = vunpack.c.h.b16 %v376
    %v493 = vunpack.c.l.b16 %v377
    %v494 = vunpack.c.h.b16 %v377
    %v495 = vunpack.c.l.b16 %v378
    %v496 = vunpack.c.h.b16 %v378
    %v497 = vunpack.c.l.b16 %v379
    %v498 = vunpack.c.h.b16 %v379
    %v499 = vunpack.c.l.b16 %v380
    %v500 = vunpack.c.h.b16 %v380
    %v501 = vunpack.c.l.b16 %v381
    %v502 = vunpack.c.h.b16 %v381
    %v503 = vpack.c.b16 %v473, %v471
    %v504 = vpack.c.b16 %v474, %v472
    %v505 = vpack.c.b16 %v477, %v475
    %v506 = vpack.c.b16 %v478, %v476
    %v507 = vpack.c.b16 %v481, %v479
    %v508 = vpack.c.b16 %v482, %v480
    %v509 = vpack.c.b16 %v485, %v483
    %v510 = vpack.c.b16 %v486, %v484
    %v511 = vpack.c.b16 %v489, %v487
    %v512 = vpack.c.b16 %v490, %v488
    %v513 = vpack.c.b16 %v493, %v491
    %v514 = vpack.c.b16 %v494, %v492
    %v515 = vpack.c.b16 %v497, %v495
    %v516 = vpack.c.b16 %v498, %v496
    %v517 = vpack.c.b16 %v501, %v499
    %v518 = vpack.c.b16 %v502, %v500
    %535 = vmatpush.bf16.msra.mxu0 %v517
    %536 = vmatpush.bf16.msra.mxu0 %v515
    %537 = vmatpush.bf16.msra.mxu0 %v513
    %538 = vmatpush.bf16.msra.mxu0 %v511
    %539 = vmatpush.bf16.msra.mxu0 %v509
    %540 = vmatpush.bf16.msra.mxu0 %v507
    %541 = vmatpush.bf16.msra.mxu0 %v505
    %542 = vmatpush.bf16.msra.mxu0 %v503
    %543 = vmatmul.bf16.gmra.mxu0 %v449
    %v544 = vpop.f32.mrf.mxu0
    %v545 = vadd.f32 %v451, %v544
    %v546 = vpop.f32.mrf.mxu0
    %547 = vdwg.mxu0
    %548 = vmatpush.bf16.msra.mxu0 %v518
    %549 = vmatpush.bf16.msra.mxu0 %v516
    %550 = vmatpush.bf16.msra.mxu0 %v514
    %551 = vmatpush.bf16.msra.mxu0 %v512
    %552 = vmatpush.bf16.msra.mxu0 %v510
    %553 = vmatpush.bf16.msra.mxu0 %v508
    %554 = vmatpush.bf16.msra.mxu0 %v506
    %555 = vmatpush.bf16.msra.mxu0 %v504
    %556 = vmatmul.bf16.gmra.mxu0 %v449
    %v557 = vpop.f32.mrf.mxu0
    %v558 = vadd.f32 %v452, %v557
    %v559 = vpop.f32.mrf.mxu0
    %560 = vdwg.mxu0
    %v561 = vxor.u32 %v545, 2147483648
    %v562 = vxor.u32 %v558, 2147483648
    %v563 = vmul.f32 %v561, 1.442695
    %v564 = vpow.pop %v563
    %v565 = vmul.f32 %v562, 1.442695
    %v566 = vpow.pop %v565
    %v567 = vadd.f32 %v564, 1.0
    %v568 = vadd.f32 %v566, 1.0
    %v569 = vrcp.pop %v567
    %v570 = vmul.f32 %v567, %v569
    %v571 = vsub.f32 1.0, %v570
    %v572 = vmul.f32 %v569, %v571
    %v573 = vadd.f32 %v569, %v572
    %vm574 = vweird.f32 %v567
    %vm575 = vweird.f32 %v569
    %vm576 = vmor %vm574, %vm575
    %v577 = vsel %vm576, %v569, %v573
    %v578 = vand.u32 2147483647, %v567
    %vm579 = vcmp.eq.f32.partialorder %v578, 8.507059e+37
    %v580 = vand.u32 %v567, 2147483648
    %v581 = vor.u32 1.1754944e-38, %v580
    %v582 = vsel %vm579, %v581, %v577
    %v583 = vmul.f32 1.0, %v582
    %v584 = vrcp.pop %v568
    %v585 = vmul.f32 %v568, %v584
    %v586 = vsub.f32 1.0, %v585
    %v587 = vmul.f32 %v584, %v586
    %v588 = vadd.f32 %v584, %v587
    %vm589 = vweird.f32 %v568
    %vm590 = vweird.f32 %v584
    %vm591 = vmor %vm589, %vm590
    %v592 = vsel %vm591, %v584, %v588
    %v593 = vand.u32 2147483647, %v568
    %vm594 = vcmp.eq.f32.partialorder %v593, 8.507059e+37
    %v595 = vand.u32 %v568, 2147483648
    %v596 = vor.u32 1.1754944e-38, %v595
    %v597 = vsel %vm594, %v596, %v592
    %v598 = vmul.f32 1.0, %v597
    %v601 = vrot.slane %v598, 6
    %vm602 = vcmask 1041408
    %v603 = vsel %vm602, %v583, %v601
    %605 = vst [vmem:[%s9] sm:$0xf] %v603
    // Predicated region
    $region54: #{forward_ae.1} parent=1 // pred_check
      _
    $region55: #{forward_ae.1} parent=1 // pred_check_branch
      %607 = sbr.rel (0) target = $region57
    $region56: #{forward_ae.1} parent=1 // pred_region
      _
    $region57: #{forward_ae.1} parent=1 // pred_fallthru
      _
    // Predicated region
    $region58: #{forward_ae.1} parent=1 // pred_check
      _
    $region59: #{forward_ae.1} parent=1 // pred_check_branch
      %609 = sbr.rel (0) target = $region61
    $region60: #{forward_ae.1} parent=1 // pred_region
      %611 = vsyncadd [#allocation4], 0
      %s613 = sshll.u32 [#allocation10], 4
      %s614 = int_to_ptr.vmem [resolvable:$true] %s613
      %s615 = sshll.u32 %s10, 4
      %s616 = int_to_ptr.hbm [resolvable:$true] %s615
      %618 = dma.vmem_to_hbm [thread:$0]  %s614, 32, %s616, [#allocation4]
    $region61: #{forward_ae.1} parent=1 // pred_fallthru
      _
    // Predicated region
    $region62: #{forward_ae.1} parent=1 // pred_check
      _
    $region63: #{forward_ae.1} parent=1 // pred_check_branch
      %620 = sbr.rel (0) target = $region65
    $region64: #{forward_ae.1} parent=1 // pred_region
      _
    $region65: #{forward_ae.1} parent=1 // pred_fallthru
      _
    // Predicated region
    $region66: #{forward_ae.1} parent=1 // pred_check
      _
    $region67: #{forward_ae.1} parent=1 // pred_check_branch
      %622 = sbr.rel (0) target = $region69
    $region68: #{forward_ae.1} parent=1 // pred_region
      %624 = dma.done [#allocation4], 32
    $region69: #{forward_ae.1} parent=1 // pred_fallthru
      _
    %625 = vsyncpa [#allocation3], 1
    %626 = vsyncpa [#allocation6], 1
    %627 = vsyncpa [#allocation9], 1
    %628 = vsyncpa [#allocation4], 1

</llo_original>
